<compile_context>
chip_gen: v7x
topology: tpu7x:2x2x1
jax: 0.10.0
libtpu: 0.0.40
codegen_flags: <defaults>
</compile_context>

<pallas_src>
import jax
import jax.numpy as jnp
from jax.experimental import pallas as pl
from jax.experimental.pallas import tpu as pltpu

_MIB = 1024 * 1024
_MAX_UNROLLED_TASKS = 64  # keep the static in-kernel per-task loop short


def _many_linear_kernel(x_ref, w_ref, b_ref, o_ref):
    # x_ref: (t_blk, batch, inp_dim)
    # w_ref: (t_blk, inp_dim, out_dim)
    # b_ref: (t_blk, out_dim)
    # o_ref: (t_blk, batch, out_dim)
    t_blk = x_ref.shape[0]
    # Static per-task loop: exactly t_blk clean MXU matmuls.  Each result
    # (plus bias) is stored immediately, so no big (t_blk, batch, out_dim)
    # accumulator stays live in vregs.
    for t in range(t_blk):
        acc = jnp.dot(x_ref[t], w_ref[t], preferred_element_type=jnp.float32)
        acc = acc + b_ref[pl.ds(t, 1), :].astype(jnp.float32)  # (1, out_dim) broadcast
        o_ref[t] = acc.astype(o_ref.dtype)


def _round_up(x, m):
    return ((x + m - 1) // m) * m


def _padded_2d_bytes(rows, cols, itemsize):
    # VMEM tiles pad the last dim to 128 lanes and the 2nd-to-last to 8 sublanes.
    return _round_up(rows, 8) * _round_up(cols, 128) * itemsize


def _per_task_vmem_bytes(batch, inp_dim, out_dim, in_itemsize, out_itemsize):
    x_b = _padded_2d_bytes(batch, inp_dim, in_itemsize)
    w_b = _padded_2d_bytes(inp_dim, out_dim, in_itemsize)
    b_b = _round_up(out_dim, 128) * in_itemsize          # one padded lane-row
    o_b = _padded_2d_bytes(batch, out_dim, out_itemsize)
    return 2 * (x_b + w_b + b_b + o_b)                    # x2: double-buffering


def _tpu_vmem_and_cores():
    """(vmem_capacity_bytes, tensorcores_per_chip) with a v7x-safe fallback."""
    vmem_bytes = 64 * _MIB   # conservative: v7x per-TC VMEM
    try:
        info = pltpu.get_tpu_info()
        vmem_bytes = int(getattr(info, "vmem_capacity_bytes", vmem_bytes))
    except Exception:
        pass
    # v5e/v6e expose 128 MiB VMEM and have one TensorCore per chip;
    # v7x exposes 64 MiB per TC and has two.
    n_tc = 1 if vmem_bytes >= 100 * _MIB else 2
    return vmem_bytes, n_tc


def _choose_task_block(n_tasks, per_task_bytes, vmem_bytes, n_tc):
    budget = vmem_bytes // 2                       # ~50% of VMEM for our tiles
    max_by_vmem = max(1, budget // max(per_task_bytes, 1))
    cap = int(min(max_by_vmem, _MAX_UNROLLED_TASKS))

    # Legal candidates: multiples of 8 that divide n_tasks (t_blk is the
    # sublane dim of the 2-D bias / output BlockSpecs), plus the always-legal
    # full task extent.
    cands = [c for c in range(8, min(n_tasks, cap) + 1, 8) if n_tasks % c == 0]
    if n_tasks <= cap:
        cands.append(n_tasks)
    if not cands:
        # TODO(synk): tile batch/inp_dim/out_dim when even an 8-task block
        # exceeds the VMEM budget; fall back to the smallest legal block.
        div8 = [c for c in range(8, n_tasks + 1, 8) if n_tasks % c == 0]
        return div8[0] if div8 else n_tasks

    cands = sorted(set(cands), reverse=True)       # largest block first
    # Multi-TC parts: prefer >= 2 grid steps per TensorCore (double-buffering
    # per core), then >= 1 per core.  Single-TC parts: fewest, biggest steps
    # win (the grid is a serial loop with ~0.35 us fixed cost per step).
    step_targets = (2 * n_tc, n_tc, 1) if n_tc > 1 else (1,)
    for min_steps in step_targets:
        for c in cands:
            if n_tasks // c >= min_steps:
                return c
    return cands[0]


def _vmem_limit_bytes(tiles_bytes, vmem_bytes):
    headroom = 24 * _MIB
    want = max(32 * _MIB, tiles_bytes + 16 * _MIB)
    return int(max(16 * _MIB, min(vmem_bytes - headroom, want)))


def many_linear_clf(x, Ws, bs, *, tasks_per_block=None):
    """Pallas implementation of ManyLinearClf.forward.

    x : (n_tasks, batch, inp_dim)
    Ws: (n_tasks, inp_dim, out_dim)
    bs: (n_tasks, out_dim)
    returns (n_tasks, batch, out_dim) in x.dtype.

    For the memory-bound bf16 win, store x/Ws/bs persistently in bf16 and pass
    them in directly (no per-call cast here); accumulation is always f32.
    """
    n_tasks, batch, inp_dim = x.shape
    assert Ws.shape == (n_tasks, inp_dim, Ws.shape[-1])
    out_dim = Ws.shape[-1]
    assert bs.shape == (n_tasks, out_dim)
    out_dtype = x.dtype

    vmem_bytes, n_tc = _tpu_vmem_and_cores()
    in_itemsize = max(jnp.dtype(x.dtype).itemsize, jnp.dtype(Ws.dtype).itemsize)
    out_itemsize = jnp.dtype(out_dtype).itemsize
    per_task_bytes = _per_task_vmem_bytes(
        batch, inp_dim, out_dim, in_itemsize, out_itemsize)

    if tasks_per_block is not None:
        t_blk = int(tasks_per_block)
        assert n_tasks % t_blk == 0, "tasks_per_block must divide n_tasks"
        assert t_blk % 8 == 0 or t_blk == n_tasks, (
            "tasks_per_block must be a multiple of 8 or equal to n_tasks "
            "(it is the sublane dim of the bias/output BlockSpecs)")
    else:
        t_blk = _choose_task_block(n_tasks, per_task_bytes, vmem_bytes, n_tc)
    grid_t = n_tasks // t_blk

    vmem_limit = _vmem_limit_bytes(t_blk * per_task_bytes, vmem_bytes)

    flops = 2 * n_tasks * batch * inp_dim * out_dim
    bytes_accessed = (
        x.size * jnp.dtype(x.dtype).itemsize
        + Ws.size * jnp.dtype(Ws.dtype).itemsize
        + bs.size * jnp.dtype(bs.dtype).itemsize
        + n_tasks * batch * out_dim * out_itemsize)

    return pl.pallas_call(
        _many_linear_kernel,
        out_shape=jax.ShapeDtypeStruct((n_tasks, batch, out_dim), out_dtype),
        grid_spec=pltpu.PrefetchScalarGridSpec(
            num_scalar_prefetch=0,
            grid=(grid_t,),
            in_specs=[
                pl.BlockSpec((t_blk, batch, inp_dim), lambda t: (t, 0, 0)),
                pl.BlockSpec((t_blk, inp_dim, out_dim), lambda t: (t, 0, 0)),
                pl.BlockSpec((t_blk, out_dim), lambda t: (t, 0)),
            ],
            out_specs=pl.BlockSpec((t_blk, batch, out_dim), lambda t: (t, 0, 0)),
        ),
        compiler_params=pltpu.CompilerParams(
            dimension_semantics=("parallel",),
            vmem_limit_bytes=vmem_limit,
        ),
        cost_estimate=pl.CostEstimate(
            flops=flops, transcendentals=0, bytes_accessed=bytes_accessed),
    )(x, Ws, bs)


if __name__ == "__main__":
    # Small shapes consistent with the module's forward (bmm over tasks).
    n_tasks, batch, inp_dim, out_dim = 32, 8, 32, 16

    key = jax.random.PRNGKey(0)
    kx, kw, kb = jax.random.split(key, 3)

    x = jax.random.normal(kx, (n_tasks, batch, inp_dim), dtype=jnp.float32)
    # The nn.Parameter init is zeros; use deterministic random values instead
    # so the kernel output is non-trivial.
    Ws = jax.random.normal(kw, (n_tasks, inp_dim, out_dim), dtype=jnp.float32)
    bs = jax.random.normal(kb, (n_tasks, out_dim), dtype=jnp.float32)

    out = jax.block_until_ready(many_linear_clf(x, Ws, bs))

    # Reference check against plain JAX (same semantics as torch.bmm + bias).
    ref = jnp.einsum("tbi,tio->tbo", x, Ws) + bs[:, None, :]
    assert out.shape == (n_tasks, batch, out_dim)
    assert jnp.allclose(out, ref, atol=1e-5, rtol=1e-5)

    print("KERNEL_OK")
</pallas_src>

<mosaic_0001>
module attributes {stable_mosaic.version = 11 : i64} {
  func.func @_many_linear_kernel(%arg0: i32, %arg1: memref<8x8x32xf32, #tpu.memory_space<vmem>>, %arg2: memref<8x32x16xf32, #tpu.memory_space<vmem>>, %arg3: memref<8x16xf32, #tpu.memory_space<vmem>>, %arg4: memref<8x8x16xf32, #tpu.memory_space<vmem>>) attributes {dimension_semantics = [#tpu.dimension_semantics<parallel>], iteration_bounds = array<i64: 4>, scalar_prefetch = 0 : i64, scratch_operands = 0 : i64, tpu.core_type = #tpu.core_type<tc>, window_params = [{transform_indices = @transform_0, window_bounds = array<i64: 8, 8, 32>}, {transform_indices = @transform_1, window_bounds = array<i64: 8, 32, 16>}, {transform_indices = @transform_2, window_bounds = array<i64: 8, 16>}, {transform_indices = @transform_3, window_bounds = array<i64: 8, 8, 16>}]} {
    %c0 = arith.constant 0 : index
    %c0_0 = arith.constant 0 : index
    %c0_1 = arith.constant 0 : index
    %0 = vector.load %arg1[%c0, %c0_0, %c0_1] : memref<8x8x32xf32, #tpu.memory_space<vmem>>, vector<1x8x32xf32>
    %1 = vector.shape_cast %0 : vector<1x8x32xf32> to vector<8x32xf32>
    %c0_2 = arith.constant 0 : index
    %c0_3 = arith.constant 0 : index
    %c0_4 = arith.constant 0 : index
    %2 = vector.load %arg2[%c0_2, %c0_3, %c0_4] : memref<8x32x16xf32, #tpu.memory_space<vmem>>, vector<1x32x16xf32>
    %3 = vector.shape_cast %2 : vector<1x32x16xf32> to vector<32x16xf32>
    %cst = arith.constant dense<0.000000e+00> : vector<8x16xf32>
    %4 = tpu.matmul %1, %3, %cst {dimension_numbers = #tpu.dot_dimension_numbers<[1], [0], [0], [1], [0, 0, 1, 1], [], []>} : vector<8x32xf32>, vector<32x16xf32>, vector<8x16xf32> -> vector<8x16xf32>
    %c0_5 = arith.constant 0 : index
    %c0_6 = arith.constant 0 : index
    %5 = vector.load %arg3[%c0_5, %c0_6] : memref<8x16xf32, #tpu.memory_space<vmem>>, vector<1x16xf32>
    %6 = vector.broadcast %5 : vector<1x16xf32> to vector<8x16xf32>
    %7 = arith.addf %4, %6 : vector<8x16xf32>
    %c0_7 = arith.constant 0 : index
    %c0_8 = arith.constant 0 : index
    %c0_9 = arith.constant 0 : index
    %8 = vector.load %arg4[%c0_7, %c0_8, %c0_9] : memref<8x8x16xf32, #tpu.memory_space<vmem>>, vector<1x8x16xf32>
    %9 = vector.shape_cast %8 : vector<1x8x16xf32> to vector<8x16xf32>
    %10 = vector.shape_cast %7 : vector<8x16xf32> to vector<1x8x16xf32>
    tpu.vector_store %arg4[%c0_7, %c0_8, %c0_9], %10 {strides = array<i32>} : memref<8x8x16xf32, #tpu.memory_space<vmem>>, vector<1x8x16xf32>,
    %c1 = arith.constant 1 : index
    %c0_10 = arith.constant 0 : index
    %c0_11 = arith.constant 0 : index
    %11 = vector.load %arg1[%c1, %c0_10, %c0_11] : memref<8x8x32xf32, #tpu.memory_space<vmem>>, vector<1x8x32xf32>
    %12 = vector.shape_cast %11 : vector<1x8x32xf32> to vector<8x32xf32>
    %c1_12 = arith.constant 1 : index
    %c0_13 = arith.constant 0 : index
    %c0_14 = arith.constant 0 : index
    %13 = vector.load %arg2[%c1_12, %c0_13, %c0_14] : memref<8x32x16xf32, #tpu.memory_space<vmem>>, vector<1x32x16xf32>
    %14 = vector.shape_cast %13 : vector<1x32x16xf32> to vector<32x16xf32>
    %cst_15 = arith.constant dense<0.000000e+00> : vector<8x16xf32>
    %15 = tpu.matmul %12, %14, %cst_15 {dimension_numbers = #tpu.dot_dimension_numbers<[1], [0], [0], [1], [0, 0, 1, 1], [], []>} : vector<8x32xf32>, vector<32x16xf32>, vector<8x16xf32> -> vector<8x16xf32>
    %c1_16 = arith.constant 1 : index
    %c0_17 = arith.constant 0 : index
    %16 = vector.load %arg3[%c1_16, %c0_17] : memref<8x16xf32, #tpu.memory_space<vmem>>, vector<1x16xf32>
    %17 = vector.broadcast %16 : vector<1x16xf32> to vector<8x16xf32>
    %18 = arith.addf %15, %17 : vector<8x16xf32>
    %c1_18 = arith.constant 1 : index
    %c0_19 = arith.constant 0 : index
    %c0_20 = arith.constant 0 : index
    %19 = vector.load %arg4[%c1_18, %c0_19, %c0_20] : memref<8x8x16xf32, #tpu.memory_space<vmem>>, vector<1x8x16xf32>
    %20 = vector.shape_cast %19 : vector<1x8x16xf32> to vector<8x16xf32>
    %21 = vector.shape_cast %18 : vector<8x16xf32> to vector<1x8x16xf32>
    tpu.vector_store %arg4[%c1_18, %c0_19, %c0_20], %21 {strides = array<i32>} : memref<8x8x16xf32, #tpu.memory_space<vmem>>, vector<1x8x16xf32>,
    %c2 = arith.constant 2 : index
    %c0_21 = arith.constant 0 : index
    %c0_22 = arith.constant 0 : index
    %22 = vector.load %arg1[%c2, %c0_21, %c0_22] : memref<8x8x32xf32, #tpu.memory_space<vmem>>, vector<1x8x32xf32>
    %23 = vector.shape_cast %22 : vector<1x8x32xf32> to vector<8x32xf32>
    %c2_23 = arith.constant 2 : index
    %c0_24 = arith.constant 0 : index
    %c0_25 = arith.constant 0 : index
    %24 = vector.load %arg2[%c2_23, %c0_24, %c0_25] : memref<8x32x16xf32, #tpu.memory_space<vmem>>, vector<1x32x16xf32>
    %25 = vector.shape_cast %24 : vector<1x32x16xf32> to vector<32x16xf32>
    %cst_26 = arith.constant dense<0.000000e+00> : vector<8x16xf32>
    %26 = tpu.matmul %23, %25, %cst_26 {dimension_numbers = #tpu.dot_dimension_numbers<[1], [0], [0], [1], [0, 0, 1, 1], [], []>} : vector<8x32xf32>, vector<32x16xf32>, vector<8x16xf32> -> vector<8x16xf32>
    %c2_27 = arith.constant 2 : index
    %c0_28 = arith.constant 0 : index
    %27 = vector.load %arg3[%c2_27, %c0_28] : memref<8x16xf32, #tpu.memory_space<vmem>>, vector<1x16xf32>
    %28 = vector.broadcast %27 : vector<1x16xf32> to vector<8x16xf32>
    %29 = arith.addf %26, %28 : vector<8x16xf32>
    %c2_29 = arith.constant 2 : index
    %c0_30 = arith.constant 0 : index
    %c0_31 = arith.constant 0 : index
    %30 = vector.load %arg4[%c2_29, %c0_30, %c0_31] : memref<8x8x16xf32, #tpu.memory_space<vmem>>, vector<1x8x16xf32>
    %31 = vector.shape_cast %30 : vector<1x8x16xf32> to vector<8x16xf32>
    %32 = vector.shape_cast %29 : vector<8x16xf32> to vector<1x8x16xf32>
    tpu.vector_store %arg4[%c2_29, %c0_30, %c0_31], %32 {strides = array<i32>} : memref<8x8x16xf32, #tpu.memory_space<vmem>>, vector<1x8x16xf32>,
    %c3 = arith.constant 3 : index
    %c0_32 = arith.constant 0 : index
    %c0_33 = arith.constant 0 : index
    %33 = vector.load %arg1[%c3, %c0_32, %c0_33] : memref<8x8x32xf32, #tpu.memory_space<vmem>>, vector<1x8x32xf32>
    %34 = vector.shape_cast %33 : vector<1x8x32xf32> to vector<8x32xf32>
    %c3_34 = arith.constant 3 : index
    %c0_35 = arith.constant 0 : index
    %c0_36 = arith.constant 0 : index
    %35 = vector.load %arg2[%c3_34, %c0_35, %c0_36] : memref<8x32x16xf32, #tpu.memory_space<vmem>>, vector<1x32x16xf32>
    %36 = vector.shape_cast %35 : vector<1x32x16xf32> to vector<32x16xf32>
    %cst_37 = arith.constant dense<0.000000e+00> : vector<8x16xf32>
    %37 = tpu.matmul %34, %36, %cst_37 {dimension_numbers = #tpu.dot_dimension_numbers<[1], [0], [0], [1], [0, 0, 1, 1], [], []>} : vector<8x32xf32>, vector<32x16xf32>, vector<8x16xf32> -> vector<8x16xf32>
    %c3_38 = arith.constant 3 : index
    %c0_39 = arith.constant 0 : index
    %38 = vector.load %arg3[%c3_38, %c0_39] : memref<8x16xf32, #tpu.memory_space<vmem>>, vector<1x16xf32>
    %39 = vector.broadcast %38 : vector<1x16xf32> to vector<8x16xf32>
    %40 = arith.addf %37, %39 : vector<8x16xf32>
    %c3_40 = arith.constant 3 : index
    %c0_41 = arith.constant 0 : index
    %c0_42 = arith.constant 0 : index
    %41 = vector.load %arg4[%c3_40, %c0_41, %c0_42] : memref<8x8x16xf32, #tpu.memory_space<vmem>>, vector<1x8x16xf32>
    %42 = vector.shape_cast %41 : vector<1x8x16xf32> to vector<8x16xf32>
    %43 = vector.shape_cast %40 : vector<8x16xf32> to vector<1x8x16xf32>
    tpu.vector_store %arg4[%c3_40, %c0_41, %c0_42], %43 {strides = array<i32>} : memref<8x8x16xf32, #tpu.memory_space<vmem>>, vector<1x8x16xf32>,
    %c4 = arith.constant 4 : index
    %c0_43 = arith.constant 0 : index
    %c0_44 = arith.constant 0 : index
    %44 = vector.load %arg1[%c4, %c0_43, %c0_44] : memref<8x8x32xf32, #tpu.memory_space<vmem>>, vector<1x8x32xf32>
    %45 = vector.shape_cast %44 : vector<1x8x32xf32> to vector<8x32xf32>
    %c4_45 = arith.constant 4 : index
    %c0_46 = arith.constant 0 : index
    %c0_47 = arith.constant 0 : index
    %46 = vector.load %arg2[%c4_45, %c0_46, %c0_47] : memref<8x32x16xf32, #tpu.memory_space<vmem>>, vector<1x32x16xf32>
    %47 = vector.shape_cast %46 : vector<1x32x16xf32> to vector<32x16xf32>
    %cst_48 = arith.constant dense<0.000000e+00> : vector<8x16xf32>
    %48 = tpu.matmul %45, %47, %cst_48 {dimension_numbers = #tpu.dot_dimension_numbers<[1], [0], [0], [1], [0, 0, 1, 1], [], []>} : vector<8x32xf32>, vector<32x16xf32>, vector<8x16xf32> -> vector<8x16xf32>
    %c4_49 = arith.constant 4 : index
    %c0_50 = arith.constant 0 : index
    %49 = vector.load %arg3[%c4_49, %c0_50] : memref<8x16xf32, #tpu.memory_space<vmem>>, vector<1x16xf32>
    %50 = vector.broadcast %49 : vector<1x16xf32> to vector<8x16xf32>
    %51 = arith.addf %48, %50 : vector<8x16xf32>
    %c4_51 = arith.constant 4 : index
    %c0_52 = arith.constant 0 : index
    %c0_53 = arith.constant 0 : index
    %52 = vector.load %arg4[%c4_51, %c0_52, %c0_53] : memref<8x8x16xf32, #tpu.memory_space<vmem>>, vector<1x8x16xf32>
    %53 = vector.shape_cast %52 : vector<1x8x16xf32> to vector<8x16xf32>
    %54 = vector.shape_cast %51 : vector<8x16xf32> to vector<1x8x16xf32>
    tpu.vector_store %arg4[%c4_51, %c0_52, %c0_53], %54 {strides = array<i32>} : memref<8x8x16xf32, #tpu.memory_space<vmem>>, vector<1x8x16xf32>,
    %c5 = arith.constant 5 : index
    %c0_54 = arith.constant 0 : index
    %c0_55 = arith.constant 0 : index
    %55 = vector.load %arg1[%c5, %c0_54, %c0_55] : memref<8x8x32xf32, #tpu.memory_space<vmem>>, vector<1x8x32xf32>
    %56 = vector.shape_cast %55 : vector<1x8x32xf32> to vector<8x32xf32>
    %c5_56 = arith.constant 5 : index
    %c0_57 = arith.constant 0 : index
    %c0_58 = arith.constant 0 : index
    %57 = vector.load %arg2[%c5_56, %c0_57, %c0_58] : memref<8x32x16xf32, #tpu.memory_space<vmem>>, vector<1x32x16xf32>
    %58 = vector.shape_cast %57 : vector<1x32x16xf32> to vector<32x16xf32>
    %cst_59 = arith.constant dense<0.000000e+00> : vector<8x16xf32>
    %59 = tpu.matmul %56, %58, %cst_59 {dimension_numbers = #tpu.dot_dimension_numbers<[1], [0], [0], [1], [0, 0, 1, 1], [], []>} : vector<8x32xf32>, vector<32x16xf32>, vector<8x16xf32> -> vector<8x16xf32>
    %c5_60 = arith.constant 5 : index
    %c0_61 = arith.constant 0 : index
    %60 = vector.load %arg3[%c5_60, %c0_61] : memref<8x16xf32, #tpu.memory_space<vmem>>, vector<1x16xf32>
    %61 = vector.broadcast %60 : vector<1x16xf32> to vector<8x16xf32>
    %62 = arith.addf %59, %61 : vector<8x16xf32>
    %c5_62 = arith.constant 5 : index
    %c0_63 = arith.constant 0 : index
    %c0_64 = arith.constant 0 : index
    %63 = vector.load %arg4[%c5_62, %c0_63, %c0_64] : memref<8x8x16xf32, #tpu.memory_space<vmem>>, vector<1x8x16xf32>
    %64 = vector.shape_cast %63 : vector<1x8x16xf32> to vector<8x16xf32>
    %65 = vector.shape_cast %62 : vector<8x16xf32> to vector<1x8x16xf32>
    tpu.vector_store %arg4[%c5_62, %c0_63, %c0_64], %65 {strides = array<i32>} : memref<8x8x16xf32, #tpu.memory_space<vmem>>, vector<1x8x16xf32>,
    %c6 = arith.constant 6 : index
    %c0_65 = arith.constant 0 : index
    %c0_66 = arith.constant 0 : index
    %66 = vector.load %arg1[%c6, %c0_65, %c0_66] : memref<8x8x32xf32, #tpu.memory_space<vmem>>, vector<1x8x32xf32>
    %67 = vector.shape_cast %66 : vector<1x8x32xf32> to vector<8x32xf32>
    %c6_67 = arith.constant 6 : index
    %c0_68 = arith.constant 0 : index
    %c0_69 = arith.constant 0 : index
    %68 = vector.load %arg2[%c6_67, %c0_68, %c0_69] : memref<8x32x16xf32, #tpu.memory_space<vmem>>, vector<1x32x16xf32>
    %69 = vector.shape_cast %68 : vector<1x32x16xf32> to vector<32x16xf32>
    %cst_70 = arith.constant dense<0.000000e+00> : vector<8x16xf32>
    %70 = tpu.matmul %67, %69, %cst_70 {dimension_numbers = #tpu.dot_dimension_numbers<[1], [0], [0], [1], [0, 0, 1, 1], [], []>} : vector<8x32xf32>, vector<32x16xf32>, vector<8x16xf32> -> vector<8x16xf32>
    %c6_71 = arith.constant 6 : index
    %c0_72 = arith.constant 0 : index
    %71 = vector.load %arg3[%c6_71, %c0_72] : memref<8x16xf32, #tpu.memory_space<vmem>>, vector<1x16xf32>
    %72 = vector.broadcast %71 : vector<1x16xf32> to vector<8x16xf32>
    %73 = arith.addf %70, %72 : vector<8x16xf32>
    %c6_73 = arith.constant 6 : index
    %c0_74 = arith.constant 0 : index
    %c0_75 = arith.constant 0 : index
    %74 = vector.load %arg4[%c6_73, %c0_74, %c0_75] : memref<8x8x16xf32, #tpu.memory_space<vmem>>, vector<1x8x16xf32>
    %75 = vector.shape_cast %74 : vector<1x8x16xf32> to vector<8x16xf32>
    %76 = vector.shape_cast %73 : vector<8x16xf32> to vector<1x8x16xf32>
    tpu.vector_store %arg4[%c6_73, %c0_74, %c0_75], %76 {strides = array<i32>} : memref<8x8x16xf32, #tpu.memory_space<vmem>>, vector<1x8x16xf32>,
    %c7 = arith.constant 7 : index
    %c0_76 = arith.constant 0 : index
    %c0_77 = arith.constant 0 : index
    %77 = vector.load %arg1[%c7, %c0_76, %c0_77] : memref<8x8x32xf32, #tpu.memory_space<vmem>>, vector<1x8x32xf32>
    %78 = vector.shape_cast %77 : vector<1x8x32xf32> to vector<8x32xf32>
    %c7_78 = arith.constant 7 : index
    %c0_79 = arith.constant 0 : index
    %c0_80 = arith.constant 0 : index
    %79 = vector.load %arg2[%c7_78, %c0_79, %c0_80] : memref<8x32x16xf32, #tpu.memory_space<vmem>>, vector<1x32x16xf32>
    %80 = vector.shape_cast %79 : vector<1x32x16xf32> to vector<32x16xf32>
    %cst_81 = arith.constant dense<0.000000e+00> : vector<8x16xf32>
    %81 = tpu.matmul %78, %80, %cst_81 {dimension_numbers = #tpu.dot_dimension_numbers<[1], [0], [0], [1], [0, 0, 1, 1], [], []>} : vector<8x32xf32>, vector<32x16xf32>, vector<8x16xf32> -> vector<8x16xf32>
    %c7_82 = arith.constant 7 : index
    %c0_83 = arith.constant 0 : index
    %82 = vector.load %arg3[%c7_82, %c0_83] : memref<8x16xf32, #tpu.memory_space<vmem>>, vector<1x16xf32>
    %83 = vector.broadcast %82 : vector<1x16xf32> to vector<8x16xf32>
    %84 = arith.addf %81, %83 : vector<8x16xf32>
    %c7_84 = arith.constant 7 : index
    %c0_85 = arith.constant 0 : index
    %c0_86 = arith.constant 0 : index
    %85 = vector.load %arg4[%c7_84, %c0_85, %c0_86] : memref<8x8x16xf32, #tpu.memory_space<vmem>>, vector<1x8x16xf32>
    %86 = vector.shape_cast %85 : vector<1x8x16xf32> to vector<8x16xf32>
    %87 = vector.shape_cast %84 : vector<8x16xf32> to vector<1x8x16xf32>
    tpu.vector_store %arg4[%c7_84, %c0_85, %c0_86], %87 {strides = array<i32>} : memref<8x8x16xf32, #tpu.memory_space<vmem>>, vector<1x8x16xf32>,
    return
  }
  func.func @transform_0(%arg0: i32) -> (i32, i32, i32) {
    %c0_i32 = arith.constant 0 : i32
    %c0_i32_0 = arith.constant 0 : i32
    %c0_i32_1 = arith.constant 0 : i32
    return %arg0, %c0_i32, %c0_i32_0 : i32, i32, i32
  }
  func.func @transform_1(%arg0: i32) -> (i32, i32, i32) {
    %c0_i32 = arith.constant 0 : i32
    %c0_i32_0 = arith.constant 0 : i32
    %c0_i32_1 = arith.constant 0 : i32
    return %arg0, %c0_i32, %c0_i32_0 : i32, i32, i32
  }
  func.func @transform_2(%arg0: i32) -> (i32, i32) {
    %c0_i32 = arith.constant 0 : i32
    %c0_i32_0 = arith.constant 0 : i32
    return %arg0, %c0_i32 : i32, i32
  }
  func.func @transform_3(%arg0: i32) -> (i32, i32, i32) {
    %c0_i32 = arith.constant 0 : i32
    %c0_i32_0 = arith.constant 0 : i32
    %c0_i32_1 = arith.constant 0 : i32
    return %arg0, %c0_i32, %c0_i32_0 : i32, i32, i32
  }
}

</mosaic_0001>

<llo_original>
// kernel: tpu_custom_call.1
$region0: #{tpu_custom_call.1}
  #allocation0 [shape = 'u32[]', space=smem, size = 0x4, offset = 0x4, fixed_abs, tag = 'smem constant byte address 0x4 - core index']
  #allocation1 [shape = 'u32[144,128]{1,0:T(1,128)}', space=vmem, size = 0x12000, scoped, tag = 'internal scratch']
  %s0 = inlined_call_operand.vmem [shape: f32[32,8,32], index: 0, kind: input, shape index: {}]
  %s1 = inlined_call_operand.vmem [shape: f32[32,32,16], index: 1, kind: input, shape index: {}]
  %s2 = inlined_call_operand.vmem [shape: f32[32,16], index: 2, kind: input, shape index: {}]
  %s3 = inlined_call_operand.vmem [shape: f32[32,8,16], index: 3, kind: output, shape index: {}]
  %s4 = sld [smem:[#allocation0]]
  $region45: #{tpu_custom_call.1} parent=0
    _
  %s6 = ssub.s32 1, %s4
  %s7 = scalar_select 0, %s6, %s4
  loop: start=0, step=1, limit=6
  $region2: #{tpu_custom_call.1} parent=0 // loop_pre_header
    _
  $region3: #{tpu_custom_call.1} parent=0 // loop_header
    %s9 = sphi 0, %s13
    %p10 = scmp.ge.s32.totalorder %s9, 6
    %s19 = sphi 0, %s21
    %s22 = sphi 0, %s19
    %s23 = sphi 0, %s22
    %s39 = sphi 0, %s23
    %s45 = sphi 0, %s47
    %s48 = sphi 0, %s45
    %s49 = sphi 0, %s48
    %s65 = sphi 0, %s49
    %s71 = sphi 0, %s73
    %s74 = sphi 0, %s71
    %s75 = sphi 0, %s74
    %s91 = sphi 0, %s75
    %s97 = sphi 0, %s99
    %s100 = sphi 0, %s97
    %s101 = sphi 0, %s100
    %s117 = sphi 0, %s101
  $region4: #{tpu_custom_call.1} parent=0 // loop_header_branch
    %12 = sbr.rel (%p10) target = $region8
  $region5: #{tpu_custom_call.1} parent=0 // loop_body
    %s14 = ssub.s32 %s9, 1
    %s15 = ssub.s32 %s9, 2
    %s16 = sadd.s32 %s9, 1
    %s17 = ssub.s32 %s9, %s16
    %p18 = scmp.eq.s32.totalorder %s17, 0
    %s20 = sadd.s32 %s19, 1
    %s21 = scalar_select %p18, %s19, %s20
    %p24 = pneg %p18
    %p25 = scmp.eq.s32.totalorder %s9, 3
    %p26 = por %p24, %p25
    %p27 = scmp.ne.s32.totalorder %s19, %s22
    %p28 = scmp.eq.s32.totalorder %s9, 0
    %p29 = por %p27, %p28
    %p30 = scmp.ne.s32.totalorder %s19, %s22
    %p31 = scmp.eq.s32.totalorder %s14, 3
    %p32 = por %p30, %p31
    %p33 = scmp.ne.s32.totalorder %s22, %s23
    %p34 = scmp.eq.s32.totalorder %s14, 0
    %p35 = por %p33, %p34
    %p36 = scmp.ne.s32.totalorder %s22, %s23
    %p37 = scmp.eq.s32.totalorder %s15, 3
    %p38 = por %p36, %p37
    %p40 = scmp.ne.s32.totalorder %s23, %s39
    %p41 = scmp.eq.s32.totalorder %s15, 0
    %p42 = por %p40, %p41
    %s43 = ssub.s32 %s9, %s16
    %p44 = scmp.eq.s32.totalorder %s43, 0
    %s46 = sadd.s32 %s45, 1
    %s47 = scalar_select %p44, %s45, %s46
    %p50 = pneg %p44
    %p51 = scmp.eq.s32.totalorder %s9, 3
    %p52 = por %p50, %p51
    %p53 = scmp.ne.s32.totalorder %s45, %s48
    %p54 = scmp.eq.s32.totalorder %s9, 0
    %p55 = por %p53, %p54
    %p56 = scmp.ne.s32.totalorder %s45, %s48
    %p57 = scmp.eq.s32.totalorder %s14, 3
    %p58 = por %p56, %p57
    %p59 = scmp.ne.s32.totalorder %s48, %s49
    %p60 = scmp.eq.s32.totalorder %s14, 0
    %p61 = por %p59, %p60
    %p62 = scmp.ne.s32.totalorder %s48, %s49
    %p63 = scmp.eq.s32.totalorder %s15, 3
    %p64 = por %p62, %p63
    %p66 = scmp.ne.s32.totalorder %s49, %s65
    %p67 = scmp.eq.s32.totalorder %s15, 0
    %p68 = por %p66, %p67
    %s69 = ssub.s32 %s9, %s16
    %p70 = scmp.eq.s32.totalorder %s69, 0
    %s72 = sadd.s32 %s71, 1
    %s73 = scalar_select %p70, %s71, %s72
    %p76 = pneg %p70
    %p77 = scmp.eq.s32.totalorder %s9, 3
    %p78 = por %p76, %p77
    %p79 = scmp.ne.s32.totalorder %s71, %s74
    %p80 = scmp.eq.s32.totalorder %s9, 0
    %p81 = por %p79, %p80
    %p82 = scmp.ne.s32.totalorder %s71, %s74
    %p83 = scmp.eq.s32.totalorder %s14, 3
    %p84 = por %p82, %p83
    %p85 = scmp.ne.s32.totalorder %s74, %s75
    %p86 = scmp.eq.s32.totalorder %s14, 0
    %p87 = por %p85, %p86
    %p88 = scmp.ne.s32.totalorder %s74, %s75
    %p89 = scmp.eq.s32.totalorder %s15, 3
    %p90 = por %p88, %p89
    %p92 = scmp.ne.s32.totalorder %s75, %s91
    %p93 = scmp.eq.s32.totalorder %s15, 0
    %p94 = por %p92, %p93
    %s95 = ssub.s32 %s9, %s16
    %p96 = scmp.eq.s32.totalorder %s95, 0
    %s98 = sadd.s32 %s97, 1
    %s99 = scalar_select %p96, %s97, %s98
    %p102 = pneg %p96
    %p103 = scmp.eq.s32.totalorder %s9, 3
    %p104 = por %p102, %p103
    %p105 = scmp.ne.s32.totalorder %s97, %s100
    %p106 = scmp.eq.s32.totalorder %s9, 0
    %p107 = por %p105, %p106
    %p108 = scmp.ne.s32.totalorder %s97, %s100
    %p109 = scmp.eq.s32.totalorder %s14, 3
    %p110 = por %p108, %p109
    %p111 = scmp.ne.s32.totalorder %s100, %s101
    %p112 = scmp.eq.s32.totalorder %s14, 0
    %p113 = por %p111, %p112
    %p114 = scmp.ne.s32.totalorder %s100, %s101
    %p115 = scmp.eq.s32.totalorder %s15, 3
    %p116 = por %p114, %p115
    %p118 = scmp.ne.s32.totalorder %s101, %s117
    %p119 = scmp.eq.s32.totalorder %s15, 0
    %p120 = por %p118, %p119
    %p121 = scmp.le.s32.totalorder 1, %s9
    %p122 = scmp.lt.s32.totalorder %s9, 5
    %p123 = pnand %p121, %p122
    %p124 = pneg %p123
    // Predicated region
    $region9: #{tpu_custom_call.1} parent=5 // pred_check
      _
    $region10: #{tpu_custom_call.1} parent=5 // pred_check_branch
      %126 = sbr.rel (%p123) target = $region12
    $region11: #{tpu_custom_call.1} parent=5 // pred_region
      %s127 = ssub.s32 %s9, 1
    $region12: #{tpu_custom_call.1} parent=5 // pred_fallthru
      _
    %p128 = scmp.lt.s32.totalorder %s9, 4
    // Predicated region
    $region13: #{tpu_custom_call.1} parent=5 // pred_check
      %p129 = pneg %p128
    $region14: #{tpu_custom_call.1} parent=5 // pred_check_branch
      %131 = sbr.rel (%p129) target = $region16
    $region15: #{tpu_custom_call.1} parent=5 // pred_region
      // Predicated region
      $region17: #{tpu_custom_call.1} parent=15 // pred_check
        %p132 = pneg %p29
      $region18: #{tpu_custom_call.1} parent=15 // pred_check_branch
        %134 = sbr.rel (%p132) target = $region20
      $region19: #{tpu_custom_call.1} parent=15 // pred_region
        %s135 = smul.u32 8, %s9
        %p136 = scmp.lt.s32.totalorder %s135, 31
        %s137 = scalar_select %p136, %s135, 31
        %s138 = smul.addr %s137, 8
        %s139 = scalar_lea.vmem %s0, %s138
        %s140 = smul.u32 8, %s9
      $region20: #{tpu_custom_call.1} parent=15 // pred_fallthru
        _
      // Predicated region
      $region21: #{tpu_custom_call.1} parent=15 // pred_check
        %p141 = pneg %p55
      $region22: #{tpu_custom_call.1} parent=15 // pred_check_branch
        %143 = sbr.rel (%p141) target = $region24
      $region23: #{tpu_custom_call.1} parent=15 // pred_region
        %s144 = smul.u32 8, %s9
        %p145 = scmp.lt.s32.totalorder %s144, 31
        %s146 = scalar_select %p145, %s144, 31
        %s147 = smul.addr %s146, 4
        %s148 = smul.addr %s147, 8
        %s149 = scalar_lea.vmem %s1, %s148
        %s150 = smul.u32 8, %s9
      $region24: #{tpu_custom_call.1} parent=15 // pred_fallthru
        _
      // Predicated region
      $region25: #{tpu_custom_call.1} parent=15 // pred_check
        %p151 = pneg %p81
      $region26: #{tpu_custom_call.1} parent=15 // pred_check_branch
        %153 = sbr.rel (%p151) target = $region28
      $region27: #{tpu_custom_call.1} parent=15 // pred_region
        %p154 = scmp.lt.s32.totalorder %s9, 3
        %s155 = scalar_select %p154, %s9, 3
        %s156 = smul.addr %s155, 8
        %s157 = scalar_lea.vmem %s2, %s156
      $region28: #{tpu_custom_call.1} parent=15 // pred_fallthru
        _
    $region16: #{tpu_custom_call.1} parent=5 // pred_fallthru
      _
    %p158 = scmp.le.s32.totalorder 1, %s9
    %p159 = scmp.lt.s32.totalorder %s9, 5
    %p160 = pnand %p158, %p159
    %p161 = pneg %p160
    // Predicated region
    $region29: #{tpu_custom_call.1} parent=5 // pred_check
      _
    $region30: #{tpu_custom_call.1} parent=5 // pred_check_branch
      %163 = sbr.rel (%p160) target = $region32
    $region31: #{tpu_custom_call.1} parent=5 // pred_region
      %s164 = ssub.s32 %s9, 1
      %s165 = smul.u32 8, %s14
      %p166 = scmp.lt.s32.totalorder %s165, 31
      %s167 = scalar_select %p166, %s165, 31
      %s168 = smul.addr %s167, 8
      %s169 = scalar_lea.vmem %s0, %s168
      %p170 = pneg %p35
      %p171 = pneg %p32
      %s172 = smul.u32 8, %s14
      %p173 = scmp.lt.s32.totalorder %s172, 31
      %s174 = scalar_select %p173, %s172, 31
      %s175 = smul.addr %s174, 4
      %s176 = smul.addr %s175, 8
      %s177 = scalar_lea.vmem %s1, %s176
      %p178 = pneg %p61
      %p179 = pneg %p58
      %p180 = scmp.lt.s32.totalorder %s14, 3
      %s181 = scalar_select %p180, %s14, 3
      %s182 = smul.addr %s181, 8
      %s183 = scalar_lea.vmem %s2, %s182
      %p184 = pneg %p87
      %p185 = pneg %p84
      %p186 = pneg %p113
      %p187 = pneg %p110
      %s188 = smul.u32 8, %s14
      %p189 = scmp.lt.s32.totalorder %s188, 31
      %s190 = scalar_select %p189, %s188, 31
      %s191 = smul.addr %s190, 8
      %s192 = scalar_lea.vmem %s3, %s191
      %s193 = smul.u32 8, %s14
      %p194 = scmp.lt.s32.totalorder %s193, 31
      %s195 = scalar_select %p194, %s193, 31
      %s196 = smul.addr %s195, 8
      %s197 = scalar_lea.vmem %s0, %s196
      %s198 = smul.u32 8, %s14
      %s199 = smul.u32 8, %s14
      %p200 = scmp.lt.s32.totalorder %s199, 31
      %s201 = scalar_select %p200, %s199, 31
      %s202 = smul.addr %s201, 4
      %s203 = smul.addr %s202, 8
      %s204 = scalar_lea.vmem %s1, %s203
      %s205 = smul.u32 8, %s14
      %p206 = scmp.lt.s32.totalorder %s14, 3
      %s207 = scalar_select %p206, %s14, 3
      %s208 = smul.addr %s207, 8
      %s209 = scalar_lea.vmem %s2, %s208
      %s210 = smul.u32 8, %s14
      %p211 = scmp.lt.s32.totalorder %s210, 31
      %s212 = scalar_select %p211, %s210, 31
      %s213 = smul.addr %s212, 8
      %s214 = scalar_lea.vmem %s3, %s213
      %s215 = smul.u32 8, %s14
      %v216 = vld [vmem:[%s197] sm:$0xff]
      %v217 = vld [vmem:[%s204] sm:$0xff]
      %v218 = vld [vmem:[%s204 + $0x8] sm:$0xff]
      %v219 = vld [vmem:[%s204 + $0x10] sm:$0xff]
      %v220 = vld [vmem:[%s204 + $0x18] sm:$0xff]
      %v221 = vld [vmem:[%s209] sm:$0x1]
      %v222 = vlaneseq
      %v223 = vshrl.u32 %v222, 7
      %v224 = vsub.s32 0, %v223
      %v225 = vrot.slane %v221, %v224
      %vm226 = vcmask 261120
      %v228 = vsel %vm226, %v216, 0
      %230 = vmatprep.subr.mxu0 0.0
      %231 = vmatpush1.msra.mxu0 %v217
      %232 = vmatprep.subr.mxu0 0.0
      %233 = vmatpush1.msra.mxu0 %v218
      %234 = vmatprep.subr.mxu0 0.0
      %235 = vmatpush1.msra.mxu0 %v219
      %236 = vmatprep.subr.mxu0 0.0
      %237 = vmatpush1.msra.mxu0 %v220
      %238 = vmatprep.subr.mxu0 0.0
      %239 = vmatpush1.msra.mxu0 0.0
      %240 = vmatprep.subr.mxu0 0.0
      %241 = vmatpush1.msra.mxu0 0.0
      %242 = vmatprep.subr.mxu0 0.0
      %243 = vmatpush1.msra.mxu0 0.0
      %244 = vmatprep.subr.mxu0 0.0
      %245 = vmatpush1.msra.mxu0 0.0
      %246 = vmatprep.subr.mxu0 0.0
      %247 = vmatpush1.msra.mxu0 0.0
      %248 = vmatprep.subr.mxu0 0.0
      %249 = vmatpush1.msra.mxu0 0.0
      %250 = vmatprep.subr.mxu0 0.0
      %251 = vmatpush1.msra.mxu0 0.0
      %252 = vmatprep.subr.mxu0 0.0
      %253 = vmatpush1.msra.mxu0 0.0
      %254 = vmatprep.subr.mxu0 0.0
      %255 = vmatpush1.msra.mxu0 0.0
      %256 = vmatprep.subr.mxu0 0.0
      %257 = vmatpush1.msra.mxu0 0.0
      %258 = vmatprep.subr.mxu0 0.0
      %259 = vmatpush1.msra.mxu0 0.0
      %260 = vmatprep.subr.mxu0 0.0
      %261 = vmatpush1.msra.mxu0 0.0
      %262 = vmatprep.subr.mxu0 0.0
      %263 = vmatpush1.msra.mxu0 0.0
      %264 = vmatprep.subr.mxu0 0.0
      %265 = vmatpush1.msra.mxu0 0.0
      %266 = vmatprep.subr.mxu0 0.0
      %267 = vmatpush1.msra.mxu0 0.0
      %268 = vmatprep.subr.mxu0 0.0
      %269 = vmatpush1.msra.mxu0 0.0
      %270 = vmatprep.subr.mxu0 0.0
      %271 = vmatpush1.msra.mxu0 0.0
      %272 = vmatprep.subr.mxu0 0.0
      %273 = vmatpush1.msra.mxu0 0.0
      %274 = vmatprep.subr.mxu0 0.0
      %275 = vmatpush1.msra.mxu0 0.0
      %276 = vmatprep.subr.mxu0 0.0
      %277 = vmatpush1.msra.mxu0 0.0
      %278 = vmatprep.subr.mxu0 0.0
      %279 = vmatpush1.msra.mxu0 0.0
      %280 = vmatprep.subr.mxu0 0.0
      %281 = vmatpush1.msra.mxu0 0.0
      %282 = vmatprep.subr.mxu0 0.0
      %283 = vmatpush1.msra.mxu0 0.0
      %284 = vmatprep.subr.mxu0 0.0
      %285 = vmatpush1.msra.mxu0 0.0
      %286 = vmatprep.subr.mxu0 0.0
      %287 = vmatpush1.msra.mxu0 0.0
      %288 = vmatprep.subr.mxu0 0.0
      %289 = vmatpush1.msra.mxu0 0.0
      %290 = vmatprep.subr.mxu0 0.0
      %291 = vmatpush1.msra.mxu0 0.0
      %292 = vmatprep.subr.mxu0 0.0
      %293 = vmatpush1.msra.mxu0 0.0
      %294 = vmatprep.mubr.f32.mxu0 0.0
      %295 = vmatmul.mubr.f32.gmra.mrb[0].mxu0 %v228
      %v296 = vpop.f32.mrb[0].mxu0
      %v297 = vadd.f32 %v225, %v296
      %v298 = vpop.f32.mrb[0].mxu0
      %299 = vdwg.mxu0
      %vm300 = vcmask 130048
      %301 = vst.msk [vmem:[%s214] sm:$0xff] %vm300, %v297
      %s302 = scalar_lea.vmem %s197, 8
      %v303 = vld [vmem:[%s302] sm:$0xff]
      %s304 = scalar_lea.vmem %s204, 32
      %v305 = vld [vmem:[%s304] sm:$0xff]
      %v306 = vld [vmem:[%s304 + $0x8] sm:$0xff]
      %v307 = vld [vmem:[%s304 + $0x10] sm:$0xff]
      %v308 = vld [vmem:[%s304 + $0x18] sm:$0xff]
      %v309 = vld [vmem:[%s209 + $0x1] sm:$0x1]
      %v310 = vlaneseq
      %v311 = vshrl.u32 %v310, 7
      %v312 = vsub.s32 0, %v311
      %v313 = vrot.slane %v309, %v312
      %v315 = vsel %vm226, %v303, 0
      %317 = vmatprep.subr.mxu0 0.0
      %318 = vmatpush1.msra.mxu0 %v305
      %319 = vmatprep.subr.mxu0 0.0
      %320 = vmatpush1.msra.mxu0 %v306
      %321 = vmatprep.subr.mxu0 0.0
      %322 = vmatpush1.msra.mxu0 %v307
      %323 = vmatprep.subr.mxu0 0.0
      %324 = vmatpush1.msra.mxu0 %v308
      %325 = vmatprep.subr.mxu0 0.0
      %326 = vmatpush1.msra.mxu0 0.0
      %327 = vmatprep.subr.mxu0 0.0
      %328 = vmatpush1.msra.mxu0 0.0
      %329 = vmatprep.subr.mxu0 0.0
      %330 = vmatpush1.msra.mxu0 0.0
      %331 = vmatprep.subr.mxu0 0.0
      %332 = vmatpush1.msra.mxu0 0.0
      %333 = vmatprep.subr.mxu0 0.0
      %334 = vmatpush1.msra.mxu0 0.0
      %335 = vmatprep.subr.mxu0 0.0
      %336 = vmatpush1.msra.mxu0 0.0
      %337 = vmatprep.subr.mxu0 0.0
      %338 = vmatpush1.msra.mxu0 0.0
      %339 = vmatprep.subr.mxu0 0.0
      %340 = vmatpush1.msra.mxu0 0.0
      %341 = vmatprep.subr.mxu0 0.0
      %342 = vmatpush1.msra.mxu0 0.0
      %343 = vmatprep.subr.mxu0 0.0
      %344 = vmatpush1.msra.mxu0 0.0
      %345 = vmatprep.subr.mxu0 0.0
      %346 = vmatpush1.msra.mxu0 0.0
      %347 = vmatprep.subr.mxu0 0.0
      %348 = vmatpush1.msra.mxu0 0.0
      %349 = vmatprep.subr.mxu0 0.0
      %350 = vmatpush1.msra.mxu0 0.0
      %351 = vmatprep.subr.mxu0 0.0
      %352 = vmatpush1.msra.mxu0 0.0
      %353 = vmatprep.subr.mxu0 0.0
      %354 = vmatpush1.msra.mxu0 0.0
      %355 = vmatprep.subr.mxu0 0.0
      %356 = vmatpush1.msra.mxu0 0.0
      %357 = vmatprep.subr.mxu0 0.0
      %358 = vmatpush1.msra.mxu0 0.0
      %359 = vmatprep.subr.mxu0 0.0
      %360 = vmatpush1.msra.mxu0 0.0
      %361 = vmatprep.subr.mxu0 0.0
      %362 = vmatpush1.msra.mxu0 0.0
      %363 = vmatprep.subr.mxu0 0.0
      %364 = vmatpush1.msra.mxu0 0.0
      %365 = vmatprep.subr.mxu0 0.0
      %366 = vmatpush1.msra.mxu0 0.0
      %367 = vmatprep.subr.mxu0 0.0
      %368 = vmatpush1.msra.mxu0 0.0
      %369 = vmatprep.subr.mxu0 0.0
      %370 = vmatpush1.msra.mxu0 0.0
      %371 = vmatprep.subr.mxu0 0.0
      %372 = vmatpush1.msra.mxu0 0.0
      %373 = vmatprep.subr.mxu0 0.0
      %374 = vmatpush1.msra.mxu0 0.0
      %375 = vmatprep.subr.mxu0 0.0
      %376 = vmatpush1.msra.mxu0 0.0
      %377 = vmatprep.subr.mxu0 0.0
      %378 = vmatpush1.msra.mxu0 0.0
      %379 = vmatprep.subr.mxu0 0.0
      %380 = vmatpush1.msra.mxu0 0.0
      %381 = vmatprep.mubr.f32.mxu0 0.0
      %382 = vmatmul.mubr.f32.gmra.mrb[0].mxu0 %v315
      %v383 = vpop.f32.mrb[0].mxu0
      %v384 = vadd.f32 %v313, %v383
      %v385 = vpop.f32.mrb[0].mxu0
      %386 = vdwg.mxu0
      %s387 = scalar_lea.vmem %s214, 8
      %388 = vst.msk [vmem:[%s387] sm:$0xff] %vm300, %v384
      %s389 = scalar_lea.vmem %s197, 16
      %v390 = vld [vmem:[%s389] sm:$0xff]
      %s391 = scalar_lea.vmem %s204, 64
      %v392 = vld [vmem:[%s391] sm:$0xff]
      %v393 = vld [vmem:[%s391 + $0x8] sm:$0xff]
      %v394 = vld [vmem:[%s391 + $0x10] sm:$0xff]
      %v395 = vld [vmem:[%s391 + $0x18] sm:$0xff]
      %v396 = vld [vmem:[%s209 + $0x2] sm:$0x1]
      %v397 = vlaneseq
      %v398 = vshrl.u32 %v397, 7
      %v399 = vsub.s32 0, %v398
      %v400 = vrot.slane %v396, %v399
      %v402 = vsel %vm226, %v390, 0
      %404 = vmatprep.subr.mxu0 0.0
      %405 = vmatpush1.msra.mxu0 %v392
      %406 = vmatprep.subr.mxu0 0.0
      %407 = vmatpush1.msra.mxu0 %v393
      %408 = vmatprep.subr.mxu0 0.0
      %409 = vmatpush1.msra.mxu0 %v394
      %410 = vmatprep.subr.mxu0 0.0
      %411 = vmatpush1.msra.mxu0 %v395
      %412 = vmatprep.subr.mxu0 0.0
      %413 = vmatpush1.msra.mxu0 0.0
      %414 = vmatprep.subr.mxu0 0.0
      %415 = vmatpush1.msra.mxu0 0.0
      %416 = vmatprep.subr.mxu0 0.0
      %417 = vmatpush1.msra.mxu0 0.0
      %418 = vmatprep.subr.mxu0 0.0
      %419 = vmatpush1.msra.mxu0 0.0
      %420 = vmatprep.subr.mxu0 0.0
      %421 = vmatpush1.msra.mxu0 0.0
      %422 = vmatprep.subr.mxu0 0.0
      %423 = vmatpush1.msra.mxu0 0.0
      %424 = vmatprep.subr.mxu0 0.0
      %425 = vmatpush1.msra.mxu0 0.0
      %426 = vmatprep.subr.mxu0 0.0
      %427 = vmatpush1.msra.mxu0 0.0
      %428 = vmatprep.subr.mxu0 0.0
      %429 = vmatpush1.msra.mxu0 0.0
      %430 = vmatprep.subr.mxu0 0.0
      %431 = vmatpush1.msra.mxu0 0.0
      %432 = vmatprep.subr.mxu0 0.0
      %433 = vmatpush1.msra.mxu0 0.0
      %434 = vmatprep.subr.mxu0 0.0
      %435 = vmatpush1.msra.mxu0 0.0
      %436 = vmatprep.subr.mxu0 0.0
      %437 = vmatpush1.msra.mxu0 0.0
      %438 = vmatprep.subr.mxu0 0.0
      %439 = vmatpush1.msra.mxu0 0.0
      %440 = vmatprep.subr.mxu0 0.0
      %441 = vmatpush1.msra.mxu0 0.0
      %442 = vmatprep.subr.mxu0 0.0
      %443 = vmatpush1.msra.mxu0 0.0
      %444 = vmatprep.subr.mxu0 0.0
      %445 = vmatpush1.msra.mxu0 0.0
      %446 = vmatprep.subr.mxu0 0.0
      %447 = vmatpush1.msra.mxu0 0.0
      %448 = vmatprep.subr.mxu0 0.0
      %449 = vmatpush1.msra.mxu0 0.0
      %450 = vmatprep.subr.mxu0 0.0
      %451 = vmatpush1.msra.mxu0 0.0
      %452 = vmatprep.subr.mxu0 0.0
      %453 = vmatpush1.msra.mxu0 0.0
      %454 = vmatprep.subr.mxu0 0.0
      %455 = vmatpush1.msra.mxu0 0.0
      %456 = vmatprep.subr.mxu0 0.0
      %457 = vmatpush1.msra.mxu0 0.0
      %458 = vmatprep.subr.mxu0 0.0
      %459 = vmatpush1.msra.mxu0 0.0
      %460 = vmatprep.subr.mxu0 0.0
      %461 = vmatpush1.msra.mxu0 0.0
      %462 = vmatprep.subr.mxu0 0.0
      %463 = vmatpush1.msra.mxu0 0.0
      %464 = vmatprep.subr.mxu0 0.0
      %465 = vmatpush1.msra.mxu0 0.0
      %466 = vmatprep.subr.mxu0 0.0
      %467 = vmatpush1.msra.mxu0 0.0
      %468 = vmatprep.mubr.f32.mxu0 0.0
      %469 = vmatmul.mubr.f32.gmra.mrb[0].mxu0 %v402
      %v470 = vpop.f32.mrb[0].mxu0
      %v471 = vadd.f32 %v400, %v470
      %v472 = vpop.f32.mrb[0].mxu0
      %473 = vdwg.mxu0
      %s474 = scalar_lea.vmem %s214, 16
      %475 = vst.msk [vmem:[%s474] sm:$0xff] %vm300, %v471
      %s476 = scalar_lea.vmem %s197, 24
      %v477 = vld [vmem:[%s476] sm:$0xff]
      %s478 = scalar_lea.vmem %s204, 96
      %v479 = vld [vmem:[%s478] sm:$0xff]
      %v480 = vld [vmem:[%s478 + $0x8] sm:$0xff]
      %v481 = vld [vmem:[%s478 + $0x10] sm:$0xff]
      %v482 = vld [vmem:[%s478 + $0x18] sm:$0xff]
      %v483 = vld [vmem:[%s209 + $0x3] sm:$0x1]
      %v484 = vlaneseq
      %v485 = vshrl.u32 %v484, 7
      %v486 = vsub.s32 0, %v485
      %v487 = vrot.slane %v483, %v486
      %v489 = vsel %vm226, %v477, 0
      %491 = vmatprep.subr.mxu0 0.0
      %492 = vmatpush1.msra.mxu0 %v479
      %493 = vmatprep.subr.mxu0 0.0
      %494 = vmatpush1.msra.mxu0 %v480
      %495 = vmatprep.subr.mxu0 0.0
      %496 = vmatpush1.msra.mxu0 %v481
      %497 = vmatprep.subr.mxu0 0.0
      %498 = vmatpush1.msra.mxu0 %v482
      %499 = vmatprep.subr.mxu0 0.0
      %500 = vmatpush1.msra.mxu0 0.0
      %501 = vmatprep.subr.mxu0 0.0
      %502 = vmatpush1.msra.mxu0 0.0
      %503 = vmatprep.subr.mxu0 0.0
      %504 = vmatpush1.msra.mxu0 0.0
      %505 = vmatprep.subr.mxu0 0.0
      %506 = vmatpush1.msra.mxu0 0.0
      %507 = vmatprep.subr.mxu0 0.0
      %508 = vmatpush1.msra.mxu0 0.0
      %509 = vmatprep.subr.mxu0 0.0
      %510 = vmatpush1.msra.mxu0 0.0
      %511 = vmatprep.subr.mxu0 0.0
      %512 = vmatpush1.msra.mxu0 0.0
      %513 = vmatprep.subr.mxu0 0.0
      %514 = vmatpush1.msra.mxu0 0.0
      %515 = vmatprep.subr.mxu0 0.0
      %516 = vmatpush1.msra.mxu0 0.0
      %517 = vmatprep.subr.mxu0 0.0
      %518 = vmatpush1.msra.mxu0 0.0
      %519 = vmatprep.subr.mxu0 0.0
      %520 = vmatpush1.msra.mxu0 0.0
      %521 = vmatprep.subr.mxu0 0.0
      %522 = vmatpush1.msra.mxu0 0.0
      %523 = vmatprep.subr.mxu0 0.0
      %524 = vmatpush1.msra.mxu0 0.0
      %525 = vmatprep.subr.mxu0 0.0
      %526 = vmatpush1.msra.mxu0 0.0
      %527 = vmatprep.subr.mxu0 0.0
      %528 = vmatpush1.msra.mxu0 0.0
      %529 = vmatprep.subr.mxu0 0.0
      %530 = vmatpush1.msra.mxu0 0.0
      %531 = vmatprep.subr.mxu0 0.0
      %532 = vmatpush1.msra.mxu0 0.0
      %533 = vmatprep.subr.mxu0 0.0
      %534 = vmatpush1.msra.mxu0 0.0
      %535 = vmatprep.subr.mxu0 0.0
      %536 = vmatpush1.msra.mxu0 0.0
      %537 = vmatprep.subr.mxu0 0.0
      %538 = vmatpush1.msra.mxu0 0.0
      %539 = vmatprep.subr.mxu0 0.0
      %540 = vmatpush1.msra.mxu0 0.0
      %541 = vmatprep.subr.mxu0 0.0
      %542 = vmatpush1.msra.mxu0 0.0
      %543 = vmatprep.subr.mxu0 0.0
      %544 = vmatpush1.msra.mxu0 0.0
      %545 = vmatprep.subr.mxu0 0.0
      %546 = vmatpush1.msra.mxu0 0.0
      %547 = vmatprep.subr.mxu0 0.0
      %548 = vmatpush1.msra.mxu0 0.0
      %549 = vmatprep.subr.mxu0 0.0
      %550 = vmatpush1.msra.mxu0 0.0
      %551 = vmatprep.subr.mxu0 0.0
      %552 = vmatpush1.msra.mxu0 0.0
      %553 = vmatprep.subr.mxu0 0.0
      %554 = vmatpush1.msra.mxu0 0.0
      %555 = vmatprep.mubr.f32.mxu0 0.0
      %556 = vmatmul.mubr.f32.gmra.mrb[0].mxu0 %v489
      %v557 = vpop.f32.mrb[0].mxu0
      %v558 = vadd.f32 %v487, %v557
      %v559 = vpop.f32.mrb[0].mxu0
      %560 = vdwg.mxu0
      %s561 = scalar_lea.vmem %s214, 24
      %562 = vst.msk [vmem:[%s561] sm:$0xff] %vm300, %v558
      %s563 = scalar_lea.vmem %s197, 32
      %v564 = vld [vmem:[%s563] sm:$0xff]
      %s565 = scalar_lea.vmem %s204, 128
      %v566 = vld [vmem:[%s565] sm:$0xff]
      %v567 = vld [vmem:[%s565 + $0x8] sm:$0xff]
      %v568 = vld [vmem:[%s565 + $0x10] sm:$0xff]
      %v569 = vld [vmem:[%s565 + $0x18] sm:$0xff]
      %v570 = vld [vmem:[%s209 + $0x4] sm:$0x1]
      %v571 = vlaneseq
      %v572 = vshrl.u32 %v571, 7
      %v573 = vsub.s32 0, %v572
      %v574 = vrot.slane %v570, %v573
      %v576 = vsel %vm226, %v564, 0
      %578 = vmatprep.subr.mxu0 0.0
      %579 = vmatpush1.msra.mxu0 %v566
      %580 = vmatprep.subr.mxu0 0.0
      %581 = vmatpush1.msra.mxu0 %v567
      %582 = vmatprep.subr.mxu0 0.0
      %583 = vmatpush1.msra.mxu0 %v568
      %584 = vmatprep.subr.mxu0 0.0
      %585 = vmatpush1.msra.mxu0 %v569
      %586 = vmatprep.subr.mxu0 0.0
      %587 = vmatpush1.msra.mxu0 0.0
      %588 = vmatprep.subr.mxu0 0.0
      %589 = vmatpush1.msra.mxu0 0.0
      %590 = vmatprep.subr.mxu0 0.0
      %591 = vmatpush1.msra.mxu0 0.0
      %592 = vmatprep.subr.mxu0 0.0
      %593 = vmatpush1.msra.mxu0 0.0
      %594 = vmatprep.subr.mxu0 0.0
      %595 = vmatpush1.msra.mxu0 0.0
      %596 = vmatprep.subr.mxu0 0.0
      %597 = vmatpush1.msra.mxu0 0.0
      %598 = vmatprep.subr.mxu0 0.0
      %599 = vmatpush1.msra.mxu0 0.0
      %600 = vmatprep.subr.mxu0 0.0
      %601 = vmatpush1.msra.mxu0 0.0
      %602 = vmatprep.subr.mxu0 0.0
      %603 = vmatpush1.msra.mxu0 0.0
      %604 = vmatprep.subr.mxu0 0.0
      %605 = vmatpush1.msra.mxu0 0.0
      %606 = vmatprep.subr.mxu0 0.0
      %607 = vmatpush1.msra.mxu0 0.0
      %608 = vmatprep.subr.mxu0 0.0
      %609 = vmatpush1.msra.mxu0 0.0
      %610 = vmatprep.subr.mxu0 0.0
      %611 = vmatpush1.msra.mxu0 0.0
      %612 = vmatprep.subr.mxu0 0.0
      %613 = vmatpush1.msra.mxu0 0.0
      %614 = vmatprep.subr.mxu0 0.0
      %615 = vmatpush1.msra.mxu0 0.0
      %616 = vmatprep.subr.mxu0 0.0
      %617 = vmatpush1.msra.mxu0 0.0
      %618 = vmatprep.subr.mxu0 0.0
      %619 = vmatpush1.msra.mxu0 0.0
      %620 = vmatprep.subr.mxu0 0.0
      %621 = vmatpush1.msra.mxu0 0.0
      %622 = vmatprep.subr.mxu0 0.0
      %623 = vmatpush1.msra.mxu0 0.0
      %624 = vmatprep.subr.mxu0 0.0
      %625 = vmatpush1.msra.mxu0 0.0
      %626 = vmatprep.subr.mxu0 0.0
      %627 = vmatpush1.msra.mxu0 0.0
      %628 = vmatprep.subr.mxu0 0.0
      %629 = vmatpush1.msra.mxu0 0.0
      %630 = vmatprep.subr.mxu0 0.0
      %631 = vmatpush1.msra.mxu0 0.0
      %632 = vmatprep.subr.mxu0 0.0
      %633 = vmatpush1.msra.mxu0 0.0
      %634 = vmatprep.subr.mxu0 0.0
      %635 = vmatpush1.msra.mxu0 0.0
      %636 = vmatprep.subr.mxu0 0.0
      %637 = vmatpush1.msra.mxu0 0.0
      %638 = vmatprep.subr.mxu0 0.0
      %639 = vmatpush1.msra.mxu0 0.0
      %640 = vmatprep.subr.mxu0 0.0
      %641 = vmatpush1.msra.mxu0 0.0
      %642 = vmatprep.mubr.f32.mxu0 0.0
      %643 = vmatmul.mubr.f32.gmra.mrb[0].mxu0 %v576
      %v644 = vpop.f32.mrb[0].mxu0
      %v645 = vadd.f32 %v574, %v644
      %v646 = vpop.f32.mrb[0].mxu0
      %647 = vdwg.mxu0
      %s648 = scalar_lea.vmem %s214, 32
      %649 = vst.msk [vmem:[%s648] sm:$0xff] %vm300, %v645
      %s650 = scalar_lea.vmem %s197, 40
      %v651 = vld [vmem:[%s650] sm:$0xff]
      %s652 = scalar_lea.vmem %s204, 160
      %v653 = vld [vmem:[%s652] sm:$0xff]
      %v654 = vld [vmem:[%s652 + $0x8] sm:$0xff]
      %v655 = vld [vmem:[%s652 + $0x10] sm:$0xff]
      %v656 = vld [vmem:[%s652 + $0x18] sm:$0xff]
      %v657 = vld [vmem:[%s209 + $0x5] sm:$0x1]
      %v658 = vlaneseq
      %v659 = vshrl.u32 %v658, 7
      %v660 = vsub.s32 0, %v659
      %v661 = vrot.slane %v657, %v660
      %v663 = vsel %vm226, %v651, 0
      %665 = vmatprep.subr.mxu0 0.0
      %666 = vmatpush1.msra.mxu0 %v653
      %667 = vmatprep.subr.mxu0 0.0
      %668 = vmatpush1.msra.mxu0 %v654
      %669 = vmatprep.subr.mxu0 0.0
      %670 = vmatpush1.msra.mxu0 %v655
      %671 = vmatprep.subr.mxu0 0.0
      %672 = vmatpush1.msra.mxu0 %v656
      %673 = vmatprep.subr.mxu0 0.0
      %674 = vmatpush1.msra.mxu0 0.0
      %675 = vmatprep.subr.mxu0 0.0
      %676 = vmatpush1.msra.mxu0 0.0
      %677 = vmatprep.subr.mxu0 0.0
      %678 = vmatpush1.msra.mxu0 0.0
      %679 = vmatprep.subr.mxu0 0.0
      %680 = vmatpush1.msra.mxu0 0.0
      %681 = vmatprep.subr.mxu0 0.0
      %682 = vmatpush1.msra.mxu0 0.0
      %683 = vmatprep.subr.mxu0 0.0
      %684 = vmatpush1.msra.mxu0 0.0
      %685 = vmatprep.subr.mxu0 0.0
      %686 = vmatpush1.msra.mxu0 0.0
      %687 = vmatprep.subr.mxu0 0.0
      %688 = vmatpush1.msra.mxu0 0.0
      %689 = vmatprep.subr.mxu0 0.0
      %690 = vmatpush1.msra.mxu0 0.0
      %691 = vmatprep.subr.mxu0 0.0
      %692 = vmatpush1.msra.mxu0 0.0
      %693 = vmatprep.subr.mxu0 0.0
      %694 = vmatpush1.msra.mxu0 0.0
      %695 = vmatprep.subr.mxu0 0.0
      %696 = vmatpush1.msra.mxu0 0.0
      %697 = vmatprep.subr.mxu0 0.0
      %698 = vmatpush1.msra.mxu0 0.0
      %699 = vmatprep.subr.mxu0 0.0
      %700 = vmatpush1.msra.mxu0 0.0
      %701 = vmatprep.subr.mxu0 0.0
      %702 = vmatpush1.msra.mxu0 0.0
      %703 = vmatprep.subr.mxu0 0.0
      %704 = vmatpush1.msra.mxu0 0.0
      %705 = vmatprep.subr.mxu0 0.0
      %706 = vmatpush1.msra.mxu0 0.0
      %707 = vmatprep.subr.mxu0 0.0
      %708 = vmatpush1.msra.mxu0 0.0
      %709 = vmatprep.subr.mxu0 0.0
      %710 = vmatpush1.msra.mxu0 0.0
      %711 = vmatprep.subr.mxu0 0.0
      %712 = vmatpush1.msra.mxu0 0.0
      %713 = vmatprep.subr.mxu0 0.0
      %714 = vmatpush1.msra.mxu0 0.0
      %715 = vmatprep.subr.mxu0 0.0
      %716 = vmatpush1.msra.mxu0 0.0
      %717 = vmatprep.subr.mxu0 0.0
      %718 = vmatpush1.msra.mxu0 0.0
      %719 = vmatprep.subr.mxu0 0.0
      %720 = vmatpush1.msra.mxu0 0.0
      %721 = vmatprep.subr.mxu0 0.0
      %722 = vmatpush1.msra.mxu0 0.0
      %723 = vmatprep.subr.mxu0 0.0
      %724 = vmatpush1.msra.mxu0 0.0
      %725 = vmatprep.subr.mxu0 0.0
      %726 = vmatpush1.msra.mxu0 0.0
      %727 = vmatprep.subr.mxu0 0.0
      %728 = vmatpush1.msra.mxu0 0.0
      %729 = vmatprep.mubr.f32.mxu0 0.0
      %730 = vmatmul.mubr.f32.gmra.mrb[0].mxu0 %v663
      %v731 = vpop.f32.mrb[0].mxu0
      %v732 = vadd.f32 %v661, %v731
      %v733 = vpop.f32.mrb[0].mxu0
      %734 = vdwg.mxu0
      %s735 = scalar_lea.vmem %s214, 40
      %736 = vst.msk [vmem:[%s735] sm:$0xff] %vm300, %v732
      %s737 = scalar_lea.vmem %s197, 48
      %v738 = vld [vmem:[%s737] sm:$0xff]
      %s739 = scalar_lea.vmem %s204, 192
      %v740 = vld [vmem:[%s739] sm:$0xff]
      %v741 = vld [vmem:[%s739 + $0x8] sm:$0xff]
      %v742 = vld [vmem:[%s739 + $0x10] sm:$0xff]
      %v743 = vld [vmem:[%s739 + $0x18] sm:$0xff]
      %v744 = vld [vmem:[%s209 + $0x6] sm:$0x1]
      %v745 = vlaneseq
      %v746 = vshrl.u32 %v745, 7
      %v747 = vsub.s32 0, %v746
      %v748 = vrot.slane %v744, %v747
      %v750 = vsel %vm226, %v738, 0
      %752 = vmatprep.subr.mxu0 0.0
      %753 = vmatpush1.msra.mxu0 %v740
      %754 = vmatprep.subr.mxu0 0.0
      %755 = vmatpush1.msra.mxu0 %v741
      %756 = vmatprep.subr.mxu0 0.0
      %757 = vmatpush1.msra.mxu0 %v742
      %758 = vmatprep.subr.mxu0 0.0
      %759 = vmatpush1.msra.mxu0 %v743
      %760 = vmatprep.subr.mxu0 0.0
      %761 = vmatpush1.msra.mxu0 0.0
      %762 = vmatprep.subr.mxu0 0.0
      %763 = vmatpush1.msra.mxu0 0.0
      %764 = vmatprep.subr.mxu0 0.0
      %765 = vmatpush1.msra.mxu0 0.0
      %766 = vmatprep.subr.mxu0 0.0
      %767 = vmatpush1.msra.mxu0 0.0
      %768 = vmatprep.subr.mxu0 0.0
      %769 = vmatpush1.msra.mxu0 0.0
      %770 = vmatprep.subr.mxu0 0.0
      %771 = vmatpush1.msra.mxu0 0.0
      %772 = vmatprep.subr.mxu0 0.0
      %773 = vmatpush1.msra.mxu0 0.0
      %774 = vmatprep.subr.mxu0 0.0
      %775 = vmatpush1.msra.mxu0 0.0
      %776 = vmatprep.subr.mxu0 0.0
      %777 = vmatpush1.msra.mxu0 0.0
      %778 = vmatprep.subr.mxu0 0.0
      %779 = vmatpush1.msra.mxu0 0.0
      %780 = vmatprep.subr.mxu0 0.0
      %781 = vmatpush1.msra.mxu0 0.0
      %782 = vmatprep.subr.mxu0 0.0
      %783 = vmatpush1.msra.mxu0 0.0
      %784 = vmatprep.subr.mxu0 0.0
      %785 = vmatpush1.msra.mxu0 0.0
      %786 = vmatprep.subr.mxu0 0.0
      %787 = vmatpush1.msra.mxu0 0.0
      %788 = vmatprep.subr.mxu0 0.0
      %789 = vmatpush1.msra.mxu0 0.0
      %790 = vmatprep.subr.mxu0 0.0
      %791 = vmatpush1.msra.mxu0 0.0
      %792 = vmatprep.subr.mxu0 0.0
      %793 = vmatpush1.msra.mxu0 0.0
      %794 = vmatprep.subr.mxu0 0.0
      %795 = vmatpush1.msra.mxu0 0.0
      %796 = vmatprep.subr.mxu0 0.0
      %797 = vmatpush1.msra.mxu0 0.0
      %798 = vmatprep.subr.mxu0 0.0
      %799 = vmatpush1.msra.mxu0 0.0
      %800 = vmatprep.subr.mxu0 0.0
      %801 = vmatpush1.msra.mxu0 0.0
      %802 = vmatprep.subr.mxu0 0.0
      %803 = vmatpush1.msra.mxu0 0.0
      %804 = vmatprep.subr.mxu0 0.0
      %805 = vmatpush1.msra.mxu0 0.0
      %806 = vmatprep.subr.mxu0 0.0
      %807 = vmatpush1.msra.mxu0 0.0
      %808 = vmatprep.subr.mxu0 0.0
      %809 = vmatpush1.msra.mxu0 0.0
      %810 = vmatprep.subr.mxu0 0.0
      %811 = vmatpush1.msra.mxu0 0.0
      %812 = vmatprep.subr.mxu0 0.0
      %813 = vmatpush1.msra.mxu0 0.0
      %814 = vmatprep.subr.mxu0 0.0
      %815 = vmatpush1.msra.mxu0 0.0
      %816 = vmatprep.mubr.f32.mxu0 0.0
      %817 = vmatmul.mubr.f32.gmra.mrb[0].mxu0 %v750
      %v818 = vpop.f32.mrb[0].mxu0
      %v819 = vadd.f32 %v748, %v818
      %v820 = vpop.f32.mrb[0].mxu0
      %821 = vdwg.mxu0
      %s822 = scalar_lea.vmem %s214, 48
      %823 = vst.msk [vmem:[%s822] sm:$0xff] %vm300, %v819
      %s824 = scalar_lea.vmem %s197, 56
      %v825 = vld [vmem:[%s824] sm:$0xff]
      %s826 = scalar_lea.vmem %s204, 224
      %v827 = vld [vmem:[%s826] sm:$0xff]
      %v828 = vld [vmem:[%s826 + $0x8] sm:$0xff]
      %v829 = vld [vmem:[%s826 + $0x10] sm:$0xff]
      %v830 = vld [vmem:[%s826 + $0x18] sm:$0xff]
      %v831 = vld [vmem:[%s209 + $0x7] sm:$0x1]
      %v832 = vlaneseq
      %v833 = vshrl.u32 %v832, 7
      %v834 = vsub.s32 0, %v833
      %v835 = vrot.slane %v831, %v834
      %v837 = vsel %vm226, %v825, 0
      %839 = vmatprep.subr.mxu0 0.0
      %840 = vmatpush1.msra.mxu0 %v827
      %841 = vmatprep.subr.mxu0 0.0
      %842 = vmatpush1.msra.mxu0 %v828
      %843 = vmatprep.subr.mxu0 0.0
      %844 = vmatpush1.msra.mxu0 %v829
      %845 = vmatprep.subr.mxu0 0.0
      %846 = vmatpush1.msra.mxu0 %v830
      %847 = vmatprep.subr.mxu0 0.0
      %848 = vmatpush1.msra.mxu0 0.0
      %849 = vmatprep.subr.mxu0 0.0
      %850 = vmatpush1.msra.mxu0 0.0
      %851 = vmatprep.subr.mxu0 0.0
      %852 = vmatpush1.msra.mxu0 0.0
      %853 = vmatprep.subr.mxu0 0.0
      %854 = vmatpush1.msra.mxu0 0.0
      %855 = vmatprep.subr.mxu0 0.0
      %856 = vmatpush1.msra.mxu0 0.0
      %857 = vmatprep.subr.mxu0 0.0
      %858 = vmatpush1.msra.mxu0 0.0
      %859 = vmatprep.subr.mxu0 0.0
      %860 = vmatpush1.msra.mxu0 0.0
      %861 = vmatprep.subr.mxu0 0.0
      %862 = vmatpush1.msra.mxu0 0.0
      %863 = vmatprep.subr.mxu0 0.0
      %864 = vmatpush1.msra.mxu0 0.0
      %865 = vmatprep.subr.mxu0 0.0
      %866 = vmatpush1.msra.mxu0 0.0
      %867 = vmatprep.subr.mxu0 0.0
      %868 = vmatpush1.msra.mxu0 0.0
      %869 = vmatprep.subr.mxu0 0.0
      %870 = vmatpush1.msra.mxu0 0.0
      %871 = vmatprep.subr.mxu0 0.0
      %872 = vmatpush1.msra.mxu0 0.0
      %873 = vmatprep.subr.mxu0 0.0
      %874 = vmatpush1.msra.mxu0 0.0
      %875 = vmatprep.subr.mxu0 0.0
      %876 = vmatpush1.msra.mxu0 0.0
      %877 = vmatprep.subr.mxu0 0.0
      %878 = vmatpush1.msra.mxu0 0.0
      %879 = vmatprep.subr.mxu0 0.0
      %880 = vmatpush1.msra.mxu0 0.0
      %881 = vmatprep.subr.mxu0 0.0
      %882 = vmatpush1.msra.mxu0 0.0
      %883 = vmatprep.subr.mxu0 0.0
      %884 = vmatpush1.msra.mxu0 0.0
      %885 = vmatprep.subr.mxu0 0.0
      %886 = vmatpush1.msra.mxu0 0.0
      %887 = vmatprep.subr.mxu0 0.0
      %888 = vmatpush1.msra.mxu0 0.0
      %889 = vmatprep.subr.mxu0 0.0
      %890 = vmatpush1.msra.mxu0 0.0
      %891 = vmatprep.subr.mxu0 0.0
      %892 = vmatpush1.msra.mxu0 0.0
      %893 = vmatprep.subr.mxu0 0.0
      %894 = vmatpush1.msra.mxu0 0.0
      %895 = vmatprep.subr.mxu0 0.0
      %896 = vmatpush1.msra.mxu0 0.0
      %897 = vmatprep.subr.mxu0 0.0
      %898 = vmatpush1.msra.mxu0 0.0
      %899 = vmatprep.subr.mxu0 0.0
      %900 = vmatpush1.msra.mxu0 0.0
      %901 = vmatprep.subr.mxu0 0.0
      %902 = vmatpush1.msra.mxu0 0.0
      %903 = vmatprep.mubr.f32.mxu0 0.0
      %904 = vmatmul.mubr.f32.gmra.mrb[0].mxu0 %v837
      %v905 = vpop.f32.mrb[0].mxu0
      %v906 = vadd.f32 %v835, %v905
      %v907 = vpop.f32.mrb[0].mxu0
      %908 = vdwg.mxu0
      %s909 = scalar_lea.vmem %s214, 56
      %910 = vst.msk [vmem:[%s909] sm:$0xff] %vm300, %v906
      %s911 = smul.u32 8, %s14
      %p912 = scmp.lt.s32.totalorder %s911, 31
      %s913 = scalar_select %p912, %s911, 31
      %s914 = smul.addr %s913, 8
      %s915 = scalar_lea.vmem %s3, %s914
      // Predicated region
      $region33: #{tpu_custom_call.1} parent=31 // pred_check
        %p916 = pneg %p110
      $region34: #{tpu_custom_call.1} parent=31 // pred_check_branch
        %918 = sbr.rel (%p916) target = $region36
      $region35: #{tpu_custom_call.1} parent=31 // pred_region
        %s919 = smul.u32 8, %s14
      $region36: #{tpu_custom_call.1} parent=31 // pred_fallthru
        _
    $region32: #{tpu_custom_call.1} parent=5 // pred_fallthru
      _
    %p920 = scmp.le.s32.totalorder 2, %s9
    // Predicated region
    $region37: #{tpu_custom_call.1} parent=5 // pred_check
      %p921 = pneg %p920
    $region38: #{tpu_custom_call.1} parent=5 // pred_check_branch
      %923 = sbr.rel (%p921) target = $region40
    $region39: #{tpu_custom_call.1} parent=5 // pred_region
      %s924 = ssub.s32 %s9, 2
      // Predicated region
      $region41: #{tpu_custom_call.1} parent=39 // pred_check
        %p925 = pneg %p116
      $region42: #{tpu_custom_call.1} parent=39 // pred_check_branch
        %927 = sbr.rel (%p925) target = $region44
      $region43: #{tpu_custom_call.1} parent=39 // pred_region
        %s928 = smul.u32 8, %s15
        %p929 = scmp.lt.s32.totalorder %s928, 31
        %s930 = scalar_select %p929, %s928, 31
        %s931 = smul.addr %s930, 8
        %s932 = scalar_lea.vmem %s3, %s931
      $region44: #{tpu_custom_call.1} parent=39 // pred_fallthru
        _
    $region40: #{tpu_custom_call.1} parent=5 // pred_fallthru
      _
  $region6: #{tpu_custom_call.1} parent=0 // loop_footer
    %s13 = sadd.s32 1, %s9
  $region7: #{tpu_custom_call.1} parent=0 // loop_footer_branch
    %8 = sbr.rel target = $region3
  $region8: #{tpu_custom_call.1} parent=0 // loop_exit
    _

</llo_original>
